<compile_context>
chip_gen: v6e
topology: v6e:2x2x1
jax: 0.10.0
libtpu: 0.0.40
codegen_flags: <defaults>
</compile_context>

<pallas_src>
import functools
import math

import jax
import jax.numpy as jnp
from jax.experimental import pallas as pl
from jax.experimental.pallas import tpu as pltpu


def _round_up(n, m):
    return ((n + m - 1) // m) * m


def _mlp_kernel(x_ref, w1_ref, b1_ref, w2_ref, b2_ref, w3_ref, b3_ref,
                mu_ref, lv_ref):
    cdt = w1_ref.dtype            # MXU operand dtype (bf16 default, f32 supported)
    f32 = jnp.float32

    # fc1 + ReLU  (low-precision operands, f32 accumulate + f32 elementwise)
    h = jnp.dot(x_ref[...], w1_ref[...], preferred_element_type=f32)
    h = jnp.maximum(h + b1_ref[...].astype(f32), 0.0)

    # fc2 + ReLU
    h = jnp.dot(h.astype(cdt), w2_ref[...], preferred_element_type=f32)
    h = jnp.maximum(h + b2_ref[...].astype(f32), 0.0)

    # fc3: single fused matmul over the concatenated [mu | logvar] columns.
    out = jnp.dot(h.astype(cdt), w3_ref[...], preferred_element_type=f32)
    out = out + b3_ref[...].astype(f32)

    z_pad = mu_ref.shape[-1]      # split is lane-tile aligned (Z_pad % 128 == 0)
    mu_ref[...] = out[:, :z_pad].astype(mu_ref.dtype)
    lv_ref[...] = out[:, z_pad:].astype(lv_ref.dtype)


def _pick_tile_b(batch, sublane):
    """Padding-aware batch tile, capped at 256 so grid >= 2 when B >= 256."""
    if batch <= 128:
        return _round_up(max(batch, sublane), sublane)
    # Minimize padding waste; break ties toward the smaller tile (more parallel
    # grid steps for v7x's 2 TensorCores).
    return min((128, 256), key=lambda tb: (_round_up(batch, tb) - batch, tb))


@functools.partial(jax.jit, static_argnames=("z_dim", "single_buffer_weights"))
def _forward(x, params, *, z_dim, single_buffer_weights):
    B, D = x.shape
    out_dtype = x.dtype
    cdt = params["w1"].dtype
    H_pad = params["w1"].shape[1]
    Z2_pad = params["w3"].shape[1]
    Z_pad = Z2_pad // 2

    # Cast x to the compute dtype once, in the wrapper (halves x HBM traffic
    # and removes the per-tile VPU cast when cdt == bf16).
    x = x.astype(cdt)

    sublane = 16 if cdt == jnp.bfloat16 else 8
    tile_b = _pick_tile_b(B, sublane)
    b_pad = _round_up(B, tile_b)
    if b_pad != B:
        x = jnp.pad(x, ((0, b_pad - B), (0, 0)))
    grid = (b_pad // tile_b,)

    if single_buffer_weights:
        # Constant block index -> double-buffering buys nothing; keep a single
        # VMEM copy of every weight/bias.
        def resident(arr):
            return pl.BlockSpec(arr.shape, lambda i: (0, 0),
                                pipeline_mode=pl.Buffered(1))
    else:
        def resident(arr):
            return pl.BlockSpec(arr.shape, lambda i: (0, 0))

    # --- VMEM budget (explicit scoped limit with ~25% headroom) ---------------
    weight_names = ("w1", "b1", "w2", "b2", "w3", "b3")
    itemsize_c = params["w1"].dtype.itemsize
    itemsize_o = jnp.dtype(out_dtype).itemsize
    weight_bytes = sum(int(params[n].size) * params[n].dtype.itemsize
                       for n in weight_names)
    wt_buffers = 1 if single_buffer_weights else 2
    io_bytes = 2 * (tile_b * D * itemsize_c + 2 * tile_b * Z_pad * itemsize_o)
    act_bytes = tile_b * H_pad * 4 + tile_b * Z2_pad * 4   # f32 h + fused fc3 out
    vmem_need = wt_buffers * weight_bytes + io_bytes + act_bytes
    vmem_limit = int(min(max(1.25 * vmem_need, 32 * 1024 * 1024),
                         128 * 1024 * 1024))

    # --- Cost estimate (computed from the padded batch) -----------------------
    flops = 2 * b_pad * (D * H_pad + H_pad * H_pad + H_pad * Z2_pad)
    bytes_accessed = (b_pad * D * itemsize_c + weight_bytes
                      + 2 * b_pad * Z_pad * itemsize_o)

    mu_p, lv_p = pl.pallas_call(
        _mlp_kernel,
        grid=grid,
        in_specs=[
            pl.BlockSpec((tile_b, D), lambda i: (i, 0)),
            resident(params["w1"]), resident(params["b1"]),
            resident(params["w2"]), resident(params["b2"]),
            resident(params["w3"]), resident(params["b3"]),
        ],
        out_specs=[pl.BlockSpec((tile_b, Z_pad), lambda i: (i, 0)),
                   pl.BlockSpec((tile_b, Z_pad), lambda i: (i, 0))],
        out_shape=[jax.ShapeDtypeStruct((b_pad, Z_pad), out_dtype),
                   jax.ShapeDtypeStruct((b_pad, Z_pad), out_dtype)],
        compiler_params=pltpu.CompilerParams(
            dimension_semantics=("parallel",),
            vmem_limit_bytes=vmem_limit),
        cost_estimate=pl.CostEstimate(flops=flops, transcendentals=0,
                                      bytes_accessed=bytes_accessed),
    )(x, params["w1"], params["b1"], params["w2"], params["b2"],
      params["w3"], params["b3"])

    # Slice off batch / lane padding (exact: padded lanes carry zero weights).
    return mu_p[:B, :z_dim], lv_p[:B, :z_dim]


def linear_inference_network(x, params, *, z_dim):
    """Pallas forward of LinearInferenceNetwork -> (mu, logvar), each (B, z_dim)."""
    try:
        return _forward(x, params, z_dim=z_dim, single_buffer_weights=True)
    except Exception:
        # Fallback for JAX builds where pipeline_mode=pl.Buffered(1) is not
        # supported on the top-level TPU pipeline; weights simply get the
        # default double-buffering (identical semantics).
        return _forward(x, params, z_dim=z_dim, single_buffer_weights=False)


def init_params(key, input_dim, z_dim, hidden_dim, dtype=jnp.bfloat16):
    """PyTorch nn.Linear-style init (U(+/- 1/sqrt(fan_in))), TPU-padded.

    Weights are stored (in_features, out_features); hidden and latent dims are
    zero-padded to multiples of 128 so every matmul / store is lane-dense.
    fc3 is stored as a single combined weight whose padded columns are
    [mu (Z_pad) | logvar (Z_pad)], matching torch.chunk(h2, 2, dim=1).
    dtype defaults to bfloat16 (bf16 MXU operands, f32 accumulate).
    """
    H_pad = max(_round_up(hidden_dim, 128), 128)
    Z_pad = max(_round_up(z_dim, 128), 128)

    k = jax.random.split(key, 6)

    def uniform_wb(kw, kb, fan_in, fan_out):
        bound = 1.0 / math.sqrt(fan_in)
        w = jax.random.uniform(kw, (fan_in, fan_out), jnp.float32, -bound, bound)
        b = jax.random.uniform(kb, (fan_out,), jnp.float32, -bound, bound)
        return w, b

    w1, b1 = uniform_wb(k[0], k[1], input_dim, hidden_dim)
    w2, b2 = uniform_wb(k[2], k[3], hidden_dim, hidden_dim)
    w3, b3 = uniform_wb(k[4], k[5], hidden_dim, 2 * z_dim)

    w1p = jnp.zeros((input_dim, H_pad), jnp.float32).at[:, :hidden_dim].set(w1)
    b1p = jnp.zeros((1, H_pad), jnp.float32).at[0, :hidden_dim].set(b1)
    w2p = jnp.zeros((H_pad, H_pad), jnp.float32).at[:hidden_dim, :hidden_dim].set(w2)
    b2p = jnp.zeros((1, H_pad), jnp.float32).at[0, :hidden_dim].set(b2)

    # torch.chunk(h2, 2, dim=1): cols [:z_dim] -> mu, cols [z_dim:] -> logvar.
    w3p = (jnp.zeros((H_pad, 2 * Z_pad), jnp.float32)
           .at[:hidden_dim, :z_dim].set(w3[:, :z_dim])
           .at[:hidden_dim, Z_pad:Z_pad + z_dim].set(w3[:, z_dim:]))
    b3p = (jnp.zeros((1, 2 * Z_pad), jnp.float32)
           .at[0, :z_dim].set(b3[:z_dim])
           .at[0, Z_pad:Z_pad + z_dim].set(b3[z_dim:]))

    return {"w1": w1p.astype(dtype), "b1": b1p.astype(dtype),
            "w2": w2p.astype(dtype), "b2": b2p.astype(dtype),
            "w3": w3p.astype(dtype), "b3": b3p.astype(dtype)}


def _reference(x, params, z_dim):
    """Pure-JAX f32 reference on the same (zero-padded) params."""
    p = {k: v.astype(jnp.float32) for k, v in params.items()}
    h = jnp.maximum(x @ p["w1"] + p["b1"], 0.0)
    h = jnp.maximum(h @ p["w2"] + p["b2"], 0.0)
    out = h @ p["w3"] + p["b3"]
    z_pad = params["w3"].shape[1] // 2
    return out[:, :z_dim], out[:, z_pad:z_pad + z_dim]


if __name__ == "__main__":
    # Small, module-consistent shapes: x is (batch, input_dim).
    batch, input_dim, z_dim, hidden_dim = 8, 16, 4, 32

    key = jax.random.PRNGKey(0)
    kx, kp = jax.random.split(key)
    x = jax.random.normal(kx, (batch, input_dim), jnp.float32)

    # f32-parameter path: exact check against the pure-JAX reference.
    params_f32 = init_params(kp, input_dim, z_dim, hidden_dim, dtype=jnp.float32)
    mu, logvar = linear_inference_network(x, params_f32, z_dim=z_dim)
    jax.block_until_ready((mu, logvar))
    mu_ref, lv_ref = _reference(x, params_f32, z_dim)
    assert mu.shape == (batch, z_dim) and logvar.shape == (batch, z_dim)
    assert jnp.allclose(mu, mu_ref, atol=1e-5, rtol=1e-5)
    assert jnp.allclose(logvar, lv_ref, atol=1e-5, rtol=1e-5)

    # Default bf16-operand path (f32 accumulate): loose tolerance vs f32 ref.
    params_bf16 = init_params(kp, input_dim, z_dim, hidden_dim)
    mu_b, lv_b = linear_inference_network(x, params_bf16, z_dim=z_dim)
    jax.block_until_ready((mu_b, lv_b))
    mu_rb, lv_rb = _reference(x, params_bf16, z_dim)
    assert mu_b.shape == (batch, z_dim) and lv_b.shape == (batch, z_dim)
    assert jnp.allclose(mu_b, mu_rb, atol=5e-2, rtol=5e-2)
    assert jnp.allclose(lv_b, lv_rb, atol=5e-2, rtol=5e-2)

    print("KERNEL_OK")
</pallas_src>

<mosaic_0001>
module attributes {stable_mosaic.version = 11 : i64} {
  func.func @_mlp_kernel(%arg0: i32, %arg1: memref<8x16xf32, #tpu.memory_space<vmem>>, %arg2: memref<16x128xf32, #tpu.memory_space<vmem>>, %arg3: memref<1x128xf32, #tpu.memory_space<vmem>>, %arg4: memref<128x128xf32, #tpu.memory_space<vmem>>, %arg5: memref<1x128xf32, #tpu.memory_space<vmem>>, %arg6: memref<128x256xf32, #tpu.memory_space<vmem>>, %arg7: memref<1x256xf32, #tpu.memory_space<vmem>>, %arg8: memref<8x128xf32, #tpu.memory_space<vmem>>, %arg9: memref<8x128xf32, #tpu.memory_space<vmem>>) attributes {dimension_semantics = [#tpu.dimension_semantics<parallel>], iteration_bounds = array<i64: 1>, scalar_prefetch = 0 : i64, scratch_operands = 0 : i64, tpu.core_type = #tpu.core_type<tc>, window_params = [{transform_indices = @transform_0, window_bounds = array<i64: 8, 16>}, {pipeline_mode = #tpu.pipeline_mode<synchronous>, transform_indices = @transform_1, window_bounds = array<i64: 16, 128>}, {pipeline_mode = #tpu.pipeline_mode<synchronous>, transform_indices = @transform_2, window_bounds = array<i64: 1, 128>}, {pipeline_mode = #tpu.pipeline_mode<synchronous>, transform_indices = @transform_3, window_bounds = array<i64: 128, 128>}, {pipeline_mode = #tpu.pipeline_mode<synchronous>, transform_indices = @transform_4, window_bounds = array<i64: 1, 128>}, {pipeline_mode = #tpu.pipeline_mode<synchronous>, transform_indices = @transform_5, window_bounds = array<i64: 128, 256>}, {pipeline_mode = #tpu.pipeline_mode<synchronous>, transform_indices = @transform_6, window_bounds = array<i64: 1, 256>}, {transform_indices = @transform_7, window_bounds = array<i64: 8, 128>}, {transform_indices = @transform_8, window_bounds = array<i64: 8, 128>}]} {
    %c0 = arith.constant 0 : index
    %c0_0 = arith.constant 0 : index
    %0 = vector.load %arg1[%c0, %c0_0] : memref<8x16xf32, #tpu.memory_space<vmem>>, vector<8x16xf32>
    %c0_1 = arith.constant 0 : index
    %c0_2 = arith.constant 0 : index
    %1 = vector.load %arg2[%c0_1, %c0_2] : memref<16x128xf32, #tpu.memory_space<vmem>>, vector<16x128xf32>
    %cst = arith.constant dense<0.000000e+00> : vector<8x128xf32>
    %2 = tpu.matmul %0, %1, %cst {dimension_numbers = #tpu.dot_dimension_numbers<[1], [0], [0], [1], [0, 0, 1, 1], [], []>} : vector<8x16xf32>, vector<16x128xf32>, vector<8x128xf32> -> vector<8x128xf32>
    %c0_3 = arith.constant 0 : index
    %c0_4 = arith.constant 0 : index
    %3 = vector.load %arg3[%c0_3, %c0_4] : memref<1x128xf32, #tpu.memory_space<vmem>>, vector<1x128xf32>
    %4 = vector.broadcast %3 : vector<1x128xf32> to vector<8x128xf32>
    %5 = arith.addf %2, %4 : vector<8x128xf32>
    %cst_5 = arith.constant 0.000000e+00 : f32
    %6 = vector.broadcast %cst_5 : f32 to vector<8x128xf32>
    %7 = arith.maximumf %5, %6 : vector<8x128xf32>
    %c0_6 = arith.constant 0 : index
    %c0_7 = arith.constant 0 : index
    %8 = vector.load %arg4[%c0_6, %c0_7] : memref<128x128xf32, #tpu.memory_space<vmem>>, vector<128x128xf32>
    %cst_8 = arith.constant dense<0.000000e+00> : vector<8x128xf32>
    %9 = tpu.matmul %7, %8, %cst_8 {dimension_numbers = #tpu.dot_dimension_numbers<[1], [0], [0], [1], [0, 0, 1, 1], [], []>} : vector<8x128xf32>, vector<128x128xf32>, vector<8x128xf32> -> vector<8x128xf32>
    %c0_9 = arith.constant 0 : index
    %c0_10 = arith.constant 0 : index
    %10 = vector.load %arg5[%c0_9, %c0_10] : memref<1x128xf32, #tpu.memory_space<vmem>>, vector<1x128xf32>
    %11 = vector.broadcast %10 : vector<1x128xf32> to vector<8x128xf32>
    %12 = arith.addf %9, %11 : vector<8x128xf32>
    %cst_11 = arith.constant 0.000000e+00 : f32
    %13 = vector.broadcast %cst_11 : f32 to vector<8x128xf32>
    %14 = arith.maximumf %12, %13 : vector<8x128xf32>
    %c0_12 = arith.constant 0 : index
    %c0_13 = arith.constant 0 : index
    %15 = vector.load %arg6[%c0_12, %c0_13] : memref<128x256xf32, #tpu.memory_space<vmem>>, vector<128x256xf32>
    %cst_14 = arith.constant dense<0.000000e+00> : vector<8x256xf32>
    %16 = tpu.matmul %14, %15, %cst_14 {dimension_numbers = #tpu.dot_dimension_numbers<[1], [0], [0], [1], [0, 0, 1, 1], [], []>} : vector<8x128xf32>, vector<128x256xf32>, vector<8x256xf32> -> vector<8x256xf32>
    %c0_15 = arith.constant 0 : index
    %c0_16 = arith.constant 0 : index
    %17 = vector.load %arg7[%c0_15, %c0_16] : memref<1x256xf32, #tpu.memory_space<vmem>>, vector<1x256xf32>
    %18 = vector.broadcast %17 : vector<1x256xf32> to vector<8x256xf32>
    %19 = arith.addf %16, %18 : vector<8x256xf32>
    %20 = vector.extract_strided_slice %19 {offsets = [0, 0], sizes = [8, 128], strides = [1, 1]} : vector<8x256xf32> to vector<8x128xf32>
    %c0_17 = arith.constant 0 : index
    %c0_18 = arith.constant 0 : index
    %21 = vector.load %arg8[%c0_17, %c0_18] : memref<8x128xf32, #tpu.memory_space<vmem>>, vector<8x128xf32>
    tpu.vector_store %arg8[%c0_17, %c0_18], %20 {strides = array<i32>} : memref<8x128xf32, #tpu.memory_space<vmem>>, vector<8x128xf32>,
    %22 = vector.extract_strided_slice %19 {offsets = [0, 128], sizes = [8, 128], strides = [1, 1]} : vector<8x256xf32> to vector<8x128xf32>
    %c0_19 = arith.constant 0 : index
    %c0_20 = arith.constant 0 : index
    %23 = vector.load %arg9[%c0_19, %c0_20] : memref<8x128xf32, #tpu.memory_space<vmem>>, vector<8x128xf32>
    tpu.vector_store %arg9[%c0_19, %c0_20], %22 {strides = array<i32>} : memref<8x128xf32, #tpu.memory_space<vmem>>, vector<8x128xf32>,
    return
  }
  func.func @transform_0(%arg0: i32) -> (i32, i32) {
    %c0_i32 = arith.constant 0 : i32
    %c0_i32_0 = arith.constant 0 : i32
    return %arg0, %c0_i32 : i32, i32
  }
  func.func @transform_1(%arg0: i32) -> (i32, i32) {
    %c0_i32 = arith.constant 0 : i32
    %c0_i32_0 = arith.constant 0 : i32
    %c0_i32_1 = arith.constant 0 : i32
    return %c0_i32, %c0_i32_0 : i32, i32
  }
  func.func @transform_2(%arg0: i32) -> (i32, i32) {
    %c0_i32 = arith.constant 0 : i32
    %c0_i32_0 = arith.constant 0 : i32
    %c0_i32_1 = arith.constant 0 : i32
    return %c0_i32, %c0_i32_0 : i32, i32
  }
  func.func @transform_3(%arg0: i32) -> (i32, i32) {
    %c0_i32 = arith.constant 0 : i32
    %c0_i32_0 = arith.constant 0 : i32
    %c0_i32_1 = arith.constant 0 : i32
    return %c0_i32, %c0_i32_0 : i32, i32
  }
  func.func @transform_4(%arg0: i32) -> (i32, i32) {
    %c0_i32 = arith.constant 0 : i32
    %c0_i32_0 = arith.constant 0 : i32
    %c0_i32_1 = arith.constant 0 : i32
    return %c0_i32, %c0_i32_0 : i32, i32
  }
  func.func @transform_5(%arg0: i32) -> (i32, i32) {
    %c0_i32 = arith.constant 0 : i32
    %c0_i32_0 = arith.constant 0 : i32
    %c0_i32_1 = arith.constant 0 : i32
    return %c0_i32, %c0_i32_0 : i32, i32
  }
  func.func @transform_6(%arg0: i32) -> (i32, i32) {
    %c0_i32 = arith.constant 0 : i32
    %c0_i32_0 = arith.constant 0 : i32
    %c0_i32_1 = arith.constant 0 : i32
    return %c0_i32, %c0_i32_0 : i32, i32
  }
  func.func @transform_7(%arg0: i32) -> (i32, i32) {
    %c0_i32 = arith.constant 0 : i32
    %c0_i32_0 = arith.constant 0 : i32
    return %arg0, %c0_i32 : i32, i32
  }
  func.func @transform_8(%arg0: i32) -> (i32, i32) {
    %c0_i32 = arith.constant 0 : i32
    %c0_i32_0 = arith.constant 0 : i32
    return %arg0, %c0_i32 : i32, i32
  }
}

module attributes {stable_mosaic.version = 11 : i64} {
  func.func @_mlp_kernel(%arg0: i32, %arg1: memref<8x16xf32, #tpu.memory_space<vmem>>, %arg2: memref<16x128xf32, #tpu.memory_space<vmem>>, %arg3: memref<1x128xf32, #tpu.memory_space<vmem>>, %arg4: memref<128x128xf32, #tpu.memory_space<vmem>>, %arg5: memref<1x128xf32, #tpu.memory_space<vmem>>, %arg6: memref<128x256xf32, #tpu.memory_space<vmem>>, %arg7: memref<1x256xf32, #tpu.memory_space<vmem>>, %arg8: memref<8x128xf32, #tpu.memory_space<vmem>>, %arg9: memref<8x128xf32, #tpu.memory_space<vmem>>) attributes {dimension_semantics = [#tpu.dimension_semantics<parallel>], iteration_bounds = array<i64: 1>, scalar_prefetch = 0 : i64, scratch_operands = 0 : i64, tpu.core_type = #tpu.core_type<tc>, window_params = [{transform_indices = @transform_0, window_bounds = array<i64: 8, 16>}, {pipeline_mode = #tpu.pipeline_mode<synchronous>, transform_indices = @transform_1, window_bounds = array<i64: 16, 128>}, {pipeline_mode = #tpu.pipeline_mode<synchronous>, transform_indices = @transform_2, window_bounds = array<i64: 1, 128>}, {pipeline_mode = #tpu.pipeline_mode<synchronous>, transform_indices = @transform_3, window_bounds = array<i64: 128, 128>}, {pipeline_mode = #tpu.pipeline_mode<synchronous>, transform_indices = @transform_4, window_bounds = array<i64: 1, 128>}, {pipeline_mode = #tpu.pipeline_mode<synchronous>, transform_indices = @transform_5, window_bounds = array<i64: 128, 256>}, {pipeline_mode = #tpu.pipeline_mode<synchronous>, transform_indices = @transform_6, window_bounds = array<i64: 1, 256>}, {transform_indices = @transform_7, window_bounds = array<i64: 8, 128>}, {transform_indices = @transform_8, window_bounds = array<i64: 8, 128>}]} {
    %c0 = arith.constant 0 : index
    %c0_0 = arith.constant 0 : index
    %0 = vector.load %arg1[%c0, %c0_0] : memref<8x16xf32, #tpu.memory_space<vmem>>, vector<8x16xf32>
    %c0_1 = arith.constant 0 : index
    %c0_2 = arith.constant 0 : index
    %1 = vector.load %arg2[%c0_1, %c0_2] : memref<16x128xf32, #tpu.memory_space<vmem>>, vector<16x128xf32>
    %cst = arith.constant dense<0.000000e+00> : vector<8x128xf32>
    %2 = tpu.matmul %0, %1, %cst {dimension_numbers = #tpu.dot_dimension_numbers<[1], [0], [0], [1], [0, 0, 1, 1], [], []>} : vector<8x16xf32>, vector<16x128xf32>, vector<8x128xf32> -> vector<8x128xf32>
    %c0_3 = arith.constant 0 : index
    %c0_4 = arith.constant 0 : index
    %3 = vector.load %arg3[%c0_3, %c0_4] : memref<1x128xf32, #tpu.memory_space<vmem>>, vector<1x128xf32>
    %4 = vector.broadcast %3 : vector<1x128xf32> to vector<8x128xf32>
    %5 = arith.addf %2, %4 : vector<8x128xf32>
    %cst_5 = arith.constant 0.000000e+00 : f32
    %6 = vector.broadcast %cst_5 : f32 to vector<8x128xf32>
    %7 = arith.maximumf %5, %6 : vector<8x128xf32>
    %c0_6 = arith.constant 0 : index
    %c0_7 = arith.constant 0 : index
    %8 = vector.load %arg4[%c0_6, %c0_7] : memref<128x128xf32, #tpu.memory_space<vmem>>, vector<128x128xf32>
    %cst_8 = arith.constant dense<0.000000e+00> : vector<8x128xf32>
    %9 = tpu.matmul %7, %8, %cst_8 {dimension_numbers = #tpu.dot_dimension_numbers<[1], [0], [0], [1], [0, 0, 1, 1], [], []>} : vector<8x128xf32>, vector<128x128xf32>, vector<8x128xf32> -> vector<8x128xf32>
    %c0_9 = arith.constant 0 : index
    %c0_10 = arith.constant 0 : index
    %10 = vector.load %arg5[%c0_9, %c0_10] : memref<1x128xf32, #tpu.memory_space<vmem>>, vector<1x128xf32>
    %11 = vector.broadcast %10 : vector<1x128xf32> to vector<8x128xf32>
    %12 = arith.addf %9, %11 : vector<8x128xf32>
    %cst_11 = arith.constant 0.000000e+00 : f32
    %13 = vector.broadcast %cst_11 : f32 to vector<8x128xf32>
    %14 = arith.maximumf %12, %13 : vector<8x128xf32>
    %c0_12 = arith.constant 0 : index
    %c0_13 = arith.constant 0 : index
    %15 = vector.load %arg6[%c0_12, %c0_13] : memref<128x256xf32, #tpu.memory_space<vmem>>, vector<128x256xf32>
    %cst_14 = arith.constant dense<0.000000e+00> : vector<8x256xf32>
    %16 = tpu.matmul %14, %15, %cst_14 {dimension_numbers = #tpu.dot_dimension_numbers<[1], [0], [0], [1], [0, 0, 1, 1], [], []>} : vector<8x128xf32>, vector<128x256xf32>, vector<8x256xf32> -> vector<8x256xf32>
    %c0_15 = arith.constant 0 : index
    %c0_16 = arith.constant 0 : index
    %17 = vector.load %arg7[%c0_15, %c0_16] : memref<1x256xf32, #tpu.memory_space<vmem>>, vector<1x256xf32>
    %18 = vector.broadcast %17 : vector<1x256xf32> to vector<8x256xf32>
    %19 = arith.addf %16, %18 : vector<8x256xf32>
    %20 = vector.extract_strided_slice %19 {offsets = [0, 0], sizes = [8, 128], strides = [1, 1]} : vector<8x256xf32> to vector<8x128xf32>
    %c0_17 = arith.constant 0 : index
    %c0_18 = arith.constant 0 : index
    %21 = vector.load %arg8[%c0_17, %c0_18] : memref<8x128xf32, #tpu.memory_space<vmem>>, vector<8x128xf32>
    tpu.vector_store %arg8[%c0_17, %c0_18], %20 {strides = array<i32>} : memref<8x128xf32, #tpu.memory_space<vmem>>, vector<8x128xf32>,
    %22 = vector.extract_strided_slice %19 {offsets = [0, 128], sizes = [8, 128], strides = [1, 1]} : vector<8x256xf32> to vector<8x128xf32>
    %c0_19 = arith.constant 0 : index
    %c0_20 = arith.constant 0 : index
    %23 = vector.load %arg9[%c0_19, %c0_20] : memref<8x128xf32, #tpu.memory_space<vmem>>, vector<8x128xf32>
    tpu.vector_store %arg9[%c0_19, %c0_20], %22 {strides = array<i32>} : memref<8x128xf32, #tpu.memory_space<vmem>>, vector<8x128xf32>,
    return
  }
  func.func @transform_0(%arg0: i32) -> (i32, i32) {
    %c0_i32 = arith.constant 0 : i32
    %c0_i32_0 = arith.constant 0 : i32
    return %arg0, %c0_i32 : i32, i32
  }
  func.func @transform_1(%arg0: i32) -> (i32, i32) {
    %c0_i32 = arith.constant 0 : i32
    %c0_i32_0 = arith.constant 0 : i32
    %c0_i32_1 = arith.constant 0 : i32
    return %c0_i32, %c0_i32_0 : i32, i32
  }
  func.func @transform_2(%arg0: i32) -> (i32, i32) {
    %c0_i32 = arith.constant 0 : i32
    %c0_i32_0 = arith.constant 0 : i32
    %c0_i32_1 = arith.constant 0 : i32
    return %c0_i32, %c0_i32_0 : i32, i32
  }
  func.func @transform_3(%arg0: i32) -> (i32, i32) {
    %c0_i32 = arith.constant 0 : i32
    %c0_i32_0 = arith.constant 0 : i32
    %c0_i32_1 = arith.constant 0 : i32
    return %c0_i32, %c0_i32_0 : i32, i32
  }
  func.func @transform_4(%arg0: i32) -> (i32, i32) {
    %c0_i32 = arith.constant 0 : i32
    %c0_i32_0 = arith.constant 0 : i32
    %c0_i32_1 = arith.constant 0 : i32
    return %c0_i32, %c0_i32_0 : i32, i32
  }
  func.func @transform_5(%arg0: i32) -> (i32, i32) {
    %c0_i32 = arith.constant 0 : i32
    %c0_i32_0 = arith.constant 0 : i32
    %c0_i32_1 = arith.constant 0 : i32
    return %c0_i32, %c0_i32_0 : i32, i32
  }
  func.func @transform_6(%arg0: i32) -> (i32, i32) {
    %c0_i32 = arith.constant 0 : i32
    %c0_i32_0 = arith.constant 0 : i32
    %c0_i32_1 = arith.constant 0 : i32
    return %c0_i32, %c0_i32_0 : i32, i32
  }
  func.func @transform_7(%arg0: i32) -> (i32, i32) {
    %c0_i32 = arith.constant 0 : i32
    %c0_i32_0 = arith.constant 0 : i32
    return %arg0, %c0_i32 : i32, i32
  }
  func.func @transform_8(%arg0: i32) -> (i32, i32) {
    %c0_i32 = arith.constant 0 : i32
    %c0_i32_0 = arith.constant 0 : i32
    return %arg0, %c0_i32 : i32, i32
  }
}

</mosaic_0001>

<llo_original>
// kernel: _forward.1
$region0: #{_forward.1}
  #allocation0 [shape = 'u32[]', space=smem, size = 0x4, offset = 0x4, fixed_abs, tag = 'smem constant byte address 0x4 - core index']
  #allocation1 [shape = 'u32[144,128]{1,0:T(1,128)}', space=vmem, size = 0x12000, scoped, tag = 'internal scratch']
  %s0 = inlined_call_operand.hbm [shape: f32[8,16], index: 0, kind: input, shape index: {}]
  %s1 = inlined_call_operand.hbm [shape: f32[16,128], index: 1, kind: input, shape index: {}]
  %s2 = inlined_call_operand.vmem [shape: f32[1,128], index: 2, kind: input, shape index: {}]
  %s3 = inlined_call_operand.hbm [shape: f32[128,128], index: 3, kind: input, shape index: {}]
  %s4 = inlined_call_operand.hbm [shape: f32[1,128], index: 4, kind: input, shape index: {}]
  %s5 = inlined_call_operand.hbm [shape: f32[128,256], index: 5, kind: input, shape index: {}]
  %s6 = inlined_call_operand.vmem [shape: f32[1,256], index: 6, kind: input, shape index: {}]
  %s7 = inlined_call_operand.vmem [shape: f32[8,128], index: 7, kind: output, shape index: {0}]
  %s8 = inlined_call_operand.vmem [shape: f32[8,128], index: 8, kind: output, shape index: {1}]
  %9 = xla_tuple %s7, %s8
  %s10 = sld [smem:[#allocation0]]
  $region66: #{_forward.1} parent=0
    _
  %s12 = ssub.s32 1, %s10
  %s13 = scalar_select 0, %s12, %s10
  $region1: #{_forward.1} parent=0
    #allocation2 [shape = 'u8[4096]{0}', space=vmem, size = 0x1000, scoped, tag = 'input window, operand 0, single buffered']
    #allocation3 [shape = 's32[1]{0}', space=sflag, size = 0x4, scoped, tag = 'scoped memory for _forward.1']
    #allocation4 [shape = 'u8[8192]{0}', space=vmem, size = 0x2000, scoped, tag = 'input window, operand 1, single buffered']
    #allocation5 [shape = 's32[1]{0}', space=sflag, size = 0x4, scoped, tag = 'scoped memory for _forward.1']
    #allocation6 [shape = 'u8[65536]{0}', space=vmem, size = 0x10000, scoped, tag = 'input window, operand 3, single buffered']
    #allocation7 [shape = 'u8[512]{0}', space=vmem, size = 0x400, scoped, tag = 'input window, operand 4, single buffered']
    #allocation8 [shape = 's32[1]{0}', space=sflag, size = 0x4, scoped, tag = 'scoped memory for _forward.1']
    #allocation9 [shape = 'u8[131072]{0}', space=vmem, size = 0x20000, scoped, tag = 'input window, operand 5, single buffered']
    %14 = vsyncpa [#allocation3], 0
    %15 = vsyncpa [#allocation5], 0
    %16 = vsyncpa [#allocation8], 0
    // Predicated region
    $region2: #{_forward.1} parent=1 // pred_check
      _
    $region3: #{_forward.1} parent=1 // pred_check_branch
      %18 = sbr.rel (0) target = $region5
    $region4: #{_forward.1} parent=1 // pred_region
      %s20 = ssub.s32 128, 128
      %21 = vsyncadd [#allocation3], %s20
      %s23 = sshll.u32 [#allocation2], 4
      %s24 = int_to_ptr.vmem [resolvable:$true] %s23
      %26 = dma.hbm_to_vmem [thread:$0]  %s0, 128, %s24, [#allocation3]
    $region5: #{_forward.1} parent=1 // pred_fallthru
      _
    // Predicated region
    $region6: #{_forward.1} parent=1 // pred_check
      _
    $region7: #{_forward.1} parent=1 // pred_check_branch
      %28 = sbr.rel (0) target = $region9
    $region8: #{_forward.1} parent=1 // pred_region
      %s30 = ssub.s32 256, 256
      %31 = vsyncadd [#allocation5], %s30
      %s32 = sshll.u32 [#allocation4], 4
      %s33 = int_to_ptr.vmem [resolvable:$true] %s32
      %38 = dma.hbm_to_vmem [thread:$0]  %s1, 256, %s33, [#allocation5], 128, 128, 8
    $region9: #{_forward.1} parent=1 // pred_fallthru
      _
    // Predicated region
    $region10: #{_forward.1} parent=1 // pred_check
      _
    $region11: #{_forward.1} parent=1 // pred_check_branch
      %40 = sbr.rel (0) target = $region13
    $region12: #{_forward.1} parent=1 // pred_region
      _
    $region13: #{_forward.1} parent=1 // pred_fallthru
      _
    // Predicated region
    $region14: #{_forward.1} parent=1 // pred_check
      _
    $region15: #{_forward.1} parent=1 // pred_check_branch
      %42 = sbr.rel (0) target = $region17
    $region16: #{_forward.1} parent=1 // pred_region
      %s44 = ssub.s32 2048, 2048
      %45 = vsyncadd [#allocation5], %s44
      %s46 = sshll.u32 [#allocation6], 4
      %s47 = int_to_ptr.vmem [resolvable:$true] %s46
      %52 = dma.hbm_to_vmem [thread:$0]  %s3, 2048, %s47, [#allocation5], 128, 128, 8
    $region17: #{_forward.1} parent=1 // pred_fallthru
      _
    // Predicated region
    $region18: #{_forward.1} parent=1 // pred_check
      _
    $region19: #{_forward.1} parent=1 // pred_check_branch
      %54 = sbr.rel (0) target = $region21
    $region20: #{_forward.1} parent=1 // pred_region
      %s56 = ssub.s32 16, 16
      %57 = vsyncadd [#allocation8], %s56
      %s59 = sshll.u32 [#allocation7], 4
      %s60 = int_to_ptr.vmem [resolvable:$true] %s59
      %62 = dma.hbm_to_vmem [thread:$0]  %s4, 16, %s60, [#allocation8]
    $region21: #{_forward.1} parent=1 // pred_fallthru
      _
    // Predicated region
    $region22: #{_forward.1} parent=1 // pred_check
      _
    $region23: #{_forward.1} parent=1 // pred_check_branch
      %64 = sbr.rel (0) target = $region25
    $region24: #{_forward.1} parent=1 // pred_region
      %s66 = ssub.s32 4096, 4096
      %67 = vsyncadd [#allocation8], %s66
      %s68 = sshll.u32 [#allocation9], 4
      %s69 = int_to_ptr.vmem [resolvable:$true] %s68
      %74 = dma.hbm_to_vmem [thread:$0]  %s5, 4096, %s69, [#allocation8], 256, 256, 16
    $region25: #{_forward.1} parent=1 // pred_fallthru
      _
    // Predicated region
    $region26: #{_forward.1} parent=1 // pred_check
      _
    $region27: #{_forward.1} parent=1 // pred_check_branch
      %76 = sbr.rel (0) target = $region29
    $region28: #{_forward.1} parent=1 // pred_region
      _
    $region29: #{_forward.1} parent=1 // pred_fallthru
      _
    // Predicated region
    $region30: #{_forward.1} parent=1 // pred_check
      _
    $region31: #{_forward.1} parent=1 // pred_check_branch
      %78 = sbr.rel (0) target = $region33
    $region32: #{_forward.1} parent=1 // pred_region
      %79 = dma.done [#allocation3], 128
    $region33: #{_forward.1} parent=1 // pred_fallthru
      _
    // Predicated region
    $region34: #{_forward.1} parent=1 // pred_check
      _
    $region35: #{_forward.1} parent=1 // pred_check_branch
      %81 = sbr.rel (0) target = $region37
    $region36: #{_forward.1} parent=1 // pred_region
      %82 = dma.done [#allocation5], 256
    $region37: #{_forward.1} parent=1 // pred_fallthru
      _
    // Predicated region
    $region38: #{_forward.1} parent=1 // pred_check
      _
    $region39: #{_forward.1} parent=1 // pred_check_branch
      %84 = sbr.rel (0) target = $region41
    $region40: #{_forward.1} parent=1 // pred_region
      %85 = dma.done [#allocation5], 2048
    $region41: #{_forward.1} parent=1 // pred_fallthru
      _
    // Predicated region
    $region42: #{_forward.1} parent=1 // pred_check
      _
    $region43: #{_forward.1} parent=1 // pred_check_branch
      %87 = sbr.rel (0) target = $region45
    $region44: #{_forward.1} parent=1 // pred_region
      %88 = dma.done [#allocation8], 16
    $region45: #{_forward.1} parent=1 // pred_fallthru
      _
    // Predicated region
    $region46: #{_forward.1} parent=1 // pred_check
      _
    $region47: #{_forward.1} parent=1 // pred_check_branch
      %90 = sbr.rel (0) target = $region49
    $region48: #{_forward.1} parent=1 // pred_region
      %91 = dma.done [#allocation8], 4096
    $region49: #{_forward.1} parent=1 // pred_fallthru
      _
    %v92 = vld [vmem:[#allocation2] sm:$0xff]
    %v93 = vld [vmem:[#allocation4] sm:$0xff]
    %v94 = vld [vmem:[#allocation4 + $0x8] sm:$0xff]
    %v95 = vld [vmem:[%s2] sm:$0x1]
    %v97 = vlaneseq
    %v98 = vshrl.u32 %v97, 7
    %v99 = vsub.s32 0, %v98
    %v100 = vrot.slane %v95, %v99
    %vm102 = vcmask 130048
    %v104 = vsel %vm102, %v92, 0
    %106 = vmatprep.subr.mxu0 0.0
    %107 = vmatpush1.msra.mxu0 0.0
    %108 = vmatprep.subr.mxu0 0.0
    %109 = vmatpush1.msra.mxu0 0.0
    %110 = vmatprep.subr.mxu0 0.0
    %111 = vmatpush1.msra.mxu0 0.0
    %112 = vmatprep.subr.mxu0 0.0
    %113 = vmatpush1.msra.mxu0 0.0
    %114 = vmatprep.subr.mxu0 0.0
    %115 = vmatpush1.msra.mxu0 0.0
    %116 = vmatprep.subr.mxu0 0.0
    %117 = vmatpush1.msra.mxu0 0.0
    %118 = vmatprep.subr.mxu0 0.0
    %119 = vmatpush1.msra.mxu0 0.0
    %120 = vmatprep.subr.mxu0 0.0
    %121 = vmatpush1.msra.mxu0 0.0
    %122 = vmatprep.subr.mxu0 0.0
    %123 = vmatpush1.msra.mxu0 0.0
    %124 = vmatprep.subr.mxu0 0.0
    %125 = vmatpush1.msra.mxu0 0.0
    %126 = vmatprep.subr.mxu0 0.0
    %127 = vmatpush1.msra.mxu0 0.0
    %128 = vmatprep.subr.mxu0 0.0
    %129 = vmatpush1.msra.mxu0 0.0
    %130 = vmatprep.subr.mxu0 0.0
    %131 = vmatpush1.msra.mxu0 0.0
    %132 = vmatprep.subr.mxu0 0.0
    %133 = vmatpush1.msra.mxu0 0.0
    %134 = vmatprep.subr.mxu0 0.0
    %135 = vmatpush1.msra.mxu0 %v94
    %136 = vmatprep.subr.mxu0 0.0
    %137 = vmatpush1.msra.mxu0 %v93
    %138 = vmatprep.subr.mxu0 0.0
    %139 = vmatpush2.msra.mxu0 0.0
    %140 = vmatprep.subr.mxu0 0.0
    %141 = vmatpush2.msra.mxu0 0.0
    %142 = vmatprep.subr.mxu0 0.0
    %143 = vmatpush2.msra.mxu0 0.0
    %144 = vmatprep.subr.mxu0 0.0
    %145 = vmatpush2.msra.mxu0 0.0
    %146 = vmatprep.subr.mxu0 0.0
    %147 = vmatpush2.msra.mxu0 0.0
    %148 = vmatprep.subr.mxu0 0.0
    %149 = vmatpush2.msra.mxu0 0.0
    %150 = vmatprep.subr.mxu0 0.0
    %151 = vmatpush2.msra.mxu0 0.0
    %152 = vmatprep.subr.mxu0 0.0
    %153 = vmatpush2.msra.mxu0 0.0
    %154 = vmatprep.subr.mxu0 0.0
    %155 = vmatpush2.msra.mxu0 0.0
    %156 = vmatprep.subr.mxu0 0.0
    %157 = vmatpush2.msra.mxu0 0.0
    %158 = vmatprep.subr.mxu0 0.0
    %159 = vmatpush2.msra.mxu0 0.0
    %160 = vmatprep.subr.mxu0 0.0
    %161 = vmatpush2.msra.mxu0 0.0
    %162 = vmatprep.subr.mxu0 0.0
    %163 = vmatpush2.msra.mxu0 0.0
    %164 = vmatprep.subr.mxu0 0.0
    %165 = vmatpush2.msra.mxu0 0.0
    %166 = vmatprep.subr.mxu0 0.0
    %167 = vmatpush2.msra.mxu0 0.0
    %168 = vmatprep.subr.mxu0 0.0
    %169 = vmatpush2.msra.mxu0 0.0
    %170 = vmatprep.mubr.f32.mxu0 0.0
    %171 = vmatmul.mubr.f32.gmra.mxu0 %v104
    %v172 = vpop.f32.mrf.mxu0
    %v173 = vadd.f32 %v100, %v172
    %v174 = vpop.f32.mrf.mxu0
    %175 = vdwg.mxu0
    %v176 = vmax.f32 %v173, 0.0
    %v177 = vld [vmem:[#allocation6] sm:$0xff]
    %v178 = vld [vmem:[#allocation6 + $0x8] sm:$0xff]
    %v179 = vld [vmem:[#allocation6 + $0x10] sm:$0xff]
    %v180 = vld [vmem:[#allocation6 + $0x18] sm:$0xff]
    %v181 = vld [vmem:[#allocation6 + $0x20] sm:$0xff]
    %v182 = vld [vmem:[#allocation6 + $0x28] sm:$0xff]
    %v183 = vld [vmem:[#allocation6 + $0x30] sm:$0xff]
    %v184 = vld [vmem:[#allocation6 + $0x38] sm:$0xff]
    %v185 = vld [vmem:[#allocation6 + $0x40] sm:$0xff]
    %v186 = vld [vmem:[#allocation6 + $0x48] sm:$0xff]
    %v187 = vld [vmem:[#allocation6 + $0x50] sm:$0xff]
    %v188 = vld [vmem:[#allocation6 + $0x58] sm:$0xff]
    %v189 = vld [vmem:[#allocation6 + $0x60] sm:$0xff]
    %v190 = vld [vmem:[#allocation6 + $0x68] sm:$0xff]
    %v191 = vld [vmem:[#allocation6 + $0x70] sm:$0xff]
    %v192 = vld [vmem:[#allocation6 + $0x78] sm:$0xff]
    %v193 = vld [vmem:[#allocation7] sm:$0x1]
    %v195 = vlaneseq
    %v196 = vshrl.u32 %v195, 7
    %v197 = vsub.s32 0, %v196
    %v198 = vrot.slane %v193, %v197
    %200 = vmatprep.subr.mxu0 0.0
    %201 = vmatpush1.msra.mxu0 %v192
    %202 = vmatprep.subr.mxu0 0.0
    %203 = vmatpush1.msra.mxu0 %v191
    %204 = vmatprep.subr.mxu0 0.0
    %205 = vmatpush1.msra.mxu0 %v190
    %206 = vmatprep.subr.mxu0 0.0
    %207 = vmatpush1.msra.mxu0 %v189
    %208 = vmatprep.subr.mxu0 0.0
    %209 = vmatpush1.msra.mxu0 %v188
    %210 = vmatprep.subr.mxu0 0.0
    %211 = vmatpush1.msra.mxu0 %v187
    %212 = vmatprep.subr.mxu0 0.0
    %213 = vmatpush1.msra.mxu0 %v186
    %214 = vmatprep.subr.mxu0 0.0
    %215 = vmatpush1.msra.mxu0 %v185
    %216 = vmatprep.subr.mxu0 0.0
    %217 = vmatpush1.msra.mxu0 %v184
    %218 = vmatprep.subr.mxu0 0.0
    %219 = vmatpush1.msra.mxu0 %v183
    %220 = vmatprep.subr.mxu0 0.0
    %221 = vmatpush1.msra.mxu0 %v182
    %222 = vmatprep.subr.mxu0 0.0
    %223 = vmatpush1.msra.mxu0 %v181
    %224 = vmatprep.subr.mxu0 0.0
    %225 = vmatpush1.msra.mxu0 %v180
    %226 = vmatprep.subr.mxu0 0.0
    %227 = vmatpush1.msra.mxu0 %v179
    %228 = vmatprep.subr.mxu0 0.0
    %229 = vmatpush1.msra.mxu0 %v178
    %230 = vmatprep.subr.mxu0 0.0
    %231 = vmatpush1.msra.mxu0 %v177
    %232 = vmatprep.subr.mxu0 0.0
    %233 = vmatpush2.msra.mxu0 0.0
    %234 = vmatprep.subr.mxu0 0.0
    %235 = vmatpush2.msra.mxu0 0.0
    %236 = vmatprep.subr.mxu0 0.0
    %237 = vmatpush2.msra.mxu0 0.0
    %238 = vmatprep.subr.mxu0 0.0
    %239 = vmatpush2.msra.mxu0 0.0
    %240 = vmatprep.subr.mxu0 0.0
    %241 = vmatpush2.msra.mxu0 0.0
    %242 = vmatprep.subr.mxu0 0.0
    %243 = vmatpush2.msra.mxu0 0.0
    %244 = vmatprep.subr.mxu0 0.0
    %245 = vmatpush2.msra.mxu0 0.0
    %246 = vmatprep.subr.mxu0 0.0
    %247 = vmatpush2.msra.mxu0 0.0
    %248 = vmatprep.subr.mxu0 0.0
    %249 = vmatpush2.msra.mxu0 0.0
    %250 = vmatprep.subr.mxu0 0.0
    %251 = vmatpush2.msra.mxu0 0.0
    %252 = vmatprep.subr.mxu0 0.0
    %253 = vmatpush2.msra.mxu0 0.0
    %254 = vmatprep.subr.mxu0 0.0
    %255 = vmatpush2.msra.mxu0 0.0
    %256 = vmatprep.subr.mxu0 0.0
    %257 = vmatpush2.msra.mxu0 0.0
    %258 = vmatprep.subr.mxu0 0.0
    %259 = vmatpush2.msra.mxu0 0.0
    %260 = vmatprep.subr.mxu0 0.0
    %261 = vmatpush2.msra.mxu0 0.0
    %262 = vmatprep.subr.mxu0 0.0
    %263 = vmatpush2.msra.mxu0 0.0
    %264 = vmatprep.mubr.f32.mxu0 0.0
    %265 = vmatmul.mubr.f32.gmra.mxu0 %v176
    %v266 = vpop.f32.mrf.mxu0
    %v267 = vadd.f32 %v198, %v266
    %v268 = vpop.f32.mrf.mxu0
    %269 = vdwg.mxu0
    %v270 = vmax.f32 %v267, 0.0
    %v271 = vld [vmem:[#allocation9] sm:$0xff]
    %v272 = vld [vmem:[#allocation9 + $0x8] sm:$0xff]
    %v273 = vld [vmem:[#allocation9 + $0x10] sm:$0xff]
    %v274 = vld [vmem:[#allocation9 + $0x18] sm:$0xff]
    %v275 = vld [vmem:[#allocation9 + $0x20] sm:$0xff]
    %v276 = vld [vmem:[#allocation9 + $0x28] sm:$0xff]
    %v277 = vld [vmem:[#allocation9 + $0x30] sm:$0xff]
    %v278 = vld [vmem:[#allocation9 + $0x38] sm:$0xff]
    %v279 = vld [vmem:[#allocation9 + $0x40] sm:$0xff]
    %v280 = vld [vmem:[#allocation9 + $0x48] sm:$0xff]
    %v281 = vld [vmem:[#allocation9 + $0x50] sm:$0xff]
    %v282 = vld [vmem:[#allocation9 + $0x58] sm:$0xff]
    %v283 = vld [vmem:[#allocation9 + $0x60] sm:$0xff]
    %v284 = vld [vmem:[#allocation9 + $0x68] sm:$0xff]
    %v285 = vld [vmem:[#allocation9 + $0x70] sm:$0xff]
    %v286 = vld [vmem:[#allocation9 + $0x78] sm:$0xff]
    %v287 = vld [vmem:[#allocation9 + $0x80] sm:$0xff]
    %v288 = vld [vmem:[#allocation9 + $0x88] sm:$0xff]
    %v289 = vld [vmem:[#allocation9 + $0x90] sm:$0xff]
    %v290 = vld [vmem:[#allocation9 + $0x98] sm:$0xff]
    %v291 = vld [vmem:[#allocation9 + $0xa0] sm:$0xff]
    %v292 = vld [vmem:[#allocation9 + $0xa8] sm:$0xff]
    %v293 = vld [vmem:[#allocation9 + $0xb0] sm:$0xff]
    %v294 = vld [vmem:[#allocation9 + $0xb8] sm:$0xff]
    %v295 = vld [vmem:[#allocation9 + $0xc0] sm:$0xff]
    %v296 = vld [vmem:[#allocation9 + $0xc8] sm:$0xff]
    %v297 = vld [vmem:[#allocation9 + $0xd0] sm:$0xff]
    %v298 = vld [vmem:[#allocation9 + $0xd8] sm:$0xff]
    %v299 = vld [vmem:[#allocation9 + $0xe0] sm:$0xff]
    %v300 = vld [vmem:[#allocation9 + $0xe8] sm:$0xff]
    %v301 = vld [vmem:[#allocation9 + $0xf0] sm:$0xff]
    %v302 = vld [vmem:[#allocation9 + $0xf8] sm:$0xff]
    %v303 = vld [vmem:[%s6] sm:$0x3]
    %v305 = vlaneseq
    %v306 = vshrl.u32 %v305, 7
    %v307 = vsub.s32 0, %v306
    %v308 = vrot.slane %v303, %v307
    %v309 = vlaneseq
    %v310 = vshrl.u32 %v309, 7
    %v311 = vsub.s32 1, %v310
    %v312 = vrot.slane %v303, %v311
    %315 = vmatprep.subr.mxu0 %v302
    %316 = vmatpush1.msra.mxu0 %v301
    %317 = vmatprep.subr.mxu0 %v300
    %318 = vmatpush1.msra.mxu0 %v299
    %319 = vmatprep.subr.mxu0 %v298
    %320 = vmatpush1.msra.mxu0 %v297
    %321 = vmatprep.subr.mxu0 %v296
    %322 = vmatpush1.msra.mxu0 %v295
    %323 = vmatprep.subr.mxu0 %v294
    %324 = vmatpush1.msra.mxu0 %v293
    %325 = vmatprep.subr.mxu0 %v292
    %326 = vmatpush1.msra.mxu0 %v291
    %327 = vmatprep.subr.mxu0 %v290
    %328 = vmatpush1.msra.mxu0 %v289
    %329 = vmatprep.subr.mxu0 %v288
    %330 = vmatpush1.msra.mxu0 %v287
    %331 = vmatprep.subr.mxu0 %v286
    %332 = vmatpush1.msra.mxu0 %v285
    %333 = vmatprep.subr.mxu0 %v284
    %334 = vmatpush1.msra.mxu0 %v283
    %335 = vmatprep.subr.mxu0 %v282
    %336 = vmatpush1.msra.mxu0 %v281
    %337 = vmatprep.subr.mxu0 %v280
    %338 = vmatpush1.msra.mxu0 %v279
    %339 = vmatprep.subr.mxu0 %v278
    %340 = vmatpush1.msra.mxu0 %v277
    %341 = vmatprep.subr.mxu0 %v276
    %342 = vmatpush1.msra.mxu0 %v275
    %343 = vmatprep.subr.mxu0 %v274
    %344 = vmatpush1.msra.mxu0 %v273
    %345 = vmatprep.subr.mxu0 %v272
    %346 = vmatpush1.msra.mxu0 %v271
    %347 = vmatprep.subr.mxu0 0.0
    %348 = vmatpush2.msra.mxu0 0.0
    %349 = vmatprep.subr.mxu0 0.0
    %350 = vmatpush2.msra.mxu0 0.0
    %351 = vmatprep.subr.mxu0 0.0
    %352 = vmatpush2.msra.mxu0 0.0
    %353 = vmatprep.subr.mxu0 0.0
    %354 = vmatpush2.msra.mxu0 0.0
    %355 = vmatprep.subr.mxu0 0.0
    %356 = vmatpush2.msra.mxu0 0.0
    %357 = vmatprep.subr.mxu0 0.0
    %358 = vmatpush2.msra.mxu0 0.0
    %359 = vmatprep.subr.mxu0 0.0
    %360 = vmatpush2.msra.mxu0 0.0
    %361 = vmatprep.subr.mxu0 0.0
    %362 = vmatpush2.msra.mxu0 0.0
    %363 = vmatprep.subr.mxu0 0.0
    %364 = vmatpush2.msra.mxu0 0.0
    %365 = vmatprep.subr.mxu0 0.0
    %366 = vmatpush2.msra.mxu0 0.0
    %367 = vmatprep.subr.mxu0 0.0
    %368 = vmatpush2.msra.mxu0 0.0
    %369 = vmatprep.subr.mxu0 0.0
    %370 = vmatpush2.msra.mxu0 0.0
    %371 = vmatprep.subr.mxu0 0.0
    %372 = vmatpush2.msra.mxu0 0.0
    %373 = vmatprep.subr.mxu0 0.0
    %374 = vmatpush2.msra.mxu0 0.0
    %375 = vmatprep.subr.mxu0 0.0
    %376 = vmatpush2.msra.mxu0 0.0
    %377 = vmatprep.subr.mxu0 0.0
    %378 = vmatpush2.msra.mxu0 0.0
    %379 = vmatprep.mubr.f32.mxu0 0.0
    %380 = vmatmul.mubr.f32.gmra.mxu0 %v270
    %v381 = vpop.f32.mrf.mxu0
    %v382 = vadd.f32 %v308, %v381
    %v383 = vpop.f32.mrf.mxu0
    %v384 = vadd.f32 %v312, %v383
    %385 = vdwg.mxu0
    %386 = vst [vmem:[%s7] sm:$0xff] %v382
    %387 = vst [vmem:[%s8] sm:$0xff] %v384
    // Predicated region
    $region50: #{_forward.1} parent=1 // pred_check
      _
    $region51: #{_forward.1} parent=1 // pred_check_branch
      %389 = sbr.rel (0) target = $region53
    $region52: #{_forward.1} parent=1 // pred_region
      _
    $region53: #{_forward.1} parent=1 // pred_fallthru
      _
    // Predicated region
    $region54: #{_forward.1} parent=1 // pred_check
      _
    $region55: #{_forward.1} parent=1 // pred_check_branch
      %391 = sbr.rel (0) target = $region57
    $region56: #{_forward.1} parent=1 // pred_region
      _
    $region57: #{_forward.1} parent=1 // pred_fallthru
      _
    // Predicated region
    $region58: #{_forward.1} parent=1 // pred_check
      _
    $region59: #{_forward.1} parent=1 // pred_check_branch
      %393 = sbr.rel (0) target = $region61
    $region60: #{_forward.1} parent=1 // pred_region
      _
    $region61: #{_forward.1} parent=1 // pred_fallthru
      _
    // Predicated region
    $region62: #{_forward.1} parent=1 // pred_check
      _
    $region63: #{_forward.1} parent=1 // pred_check_branch
      %395 = sbr.rel (0) target = $region65
    $region64: #{_forward.1} parent=1 // pred_region
      _
    $region65: #{_forward.1} parent=1 // pred_fallthru
      _
    %396 = vsyncpa [#allocation3], 1
    %397 = vsyncpa [#allocation5], 1
    %398 = vsyncpa [#allocation8], 1

// kernel: _forward.1
$region0: #{_forward.1}
  #allocation0 [shape = 'u32[]', space=smem, size = 0x4, offset = 0x4, fixed_abs, tag = 'smem constant byte address 0x4 - core index']
  #allocation1 [shape = 'u32[144,128]{1,0:T(1,128)}', space=vmem, size = 0x12000, scoped, tag = 'internal scratch']
  %s0 = inlined_call_operand.hbm [shape: f32[8,16], index: 0, kind: input, shape index: {}]
  %s1 = inlined_call_operand.hbm [shape: f32[16,128], index: 1, kind: input, shape index: {}]
  %s2 = inlined_call_operand.vmem [shape: f32[1,128], index: 2, kind: input, shape index: {}]
  %s3 = inlined_call_operand.hbm [shape: f32[128,128], index: 3, kind: input, shape index: {}]
  %s4 = inlined_call_operand.hbm [shape: f32[1,128], index: 4, kind: input, shape index: {}]
  %s5 = inlined_call_operand.hbm [shape: f32[128,256], index: 5, kind: input, shape index: {}]
  %s6 = inlined_call_operand.vmem [shape: f32[1,256], index: 6, kind: input, shape index: {}]
  %s7 = inlined_call_operand.vmem [shape: f32[8,128], index: 7, kind: output, shape index: {0}]
  %s8 = inlined_call_operand.vmem [shape: f32[8,128], index: 8, kind: output, shape index: {1}]
  %9 = xla_tuple %s7, %s8
  %s10 = sld [smem:[#allocation0]]
  $region66: #{_forward.1} parent=0
    _
  %s12 = ssub.s32 1, %s10
  %s13 = scalar_select 0, %s12, %s10
  $region1: #{_forward.1} parent=0
    #allocation2 [shape = 'u8[4096]{0}', space=vmem, size = 0x1000, scoped, tag = 'input window, operand 0, single buffered']
    #allocation3 [shape = 's32[1]{0}', space=sflag, size = 0x4, scoped, tag = 'scoped memory for _forward.1']
    #allocation4 [shape = 'u8[8192]{0}', space=vmem, size = 0x2000, scoped, tag = 'input window, operand 1, single buffered']
    #allocation5 [shape = 's32[1]{0}', space=sflag, size = 0x4, scoped, tag = 'scoped memory for _forward.1']
    #allocation6 [shape = 'u8[65536]{0}', space=vmem, size = 0x10000, scoped, tag = 'input window, operand 3, single buffered']
    #allocation7 [shape = 'u8[512]{0}', space=vmem, size = 0x400, scoped, tag = 'input window, operand 4, single buffered']
    #allocation8 [shape = 's32[1]{0}', space=sflag, size = 0x4, scoped, tag = 'scoped memory for _forward.1']
    #allocation9 [shape = 'u8[131072]{0}', space=vmem, size = 0x20000, scoped, tag = 'input window, operand 5, single buffered']
    %14 = vsyncpa [#allocation3], 0
    %15 = vsyncpa [#allocation5], 0
    %16 = vsyncpa [#allocation8], 0
    // Predicated region
    $region2: #{_forward.1} parent=1 // pred_check
      _
    $region3: #{_forward.1} parent=1 // pred_check_branch
      %18 = sbr.rel (0) target = $region5
    $region4: #{_forward.1} parent=1 // pred_region
      %s20 = ssub.s32 128, 128
      %21 = vsyncadd [#allocation3], %s20
      %s23 = sshll.u32 [#allocation2], 4
      %s24 = int_to_ptr.vmem [resolvable:$true] %s23
      %26 = dma.hbm_to_vmem [thread:$0]  %s0, 128, %s24, [#allocation3]
    $region5: #{_forward.1} parent=1 // pred_fallthru
      _
    // Predicated region
    $region6: #{_forward.1} parent=1 // pred_check
      _
    $region7: #{_forward.1} parent=1 // pred_check_branch
      %28 = sbr.rel (0) target = $region9
    $region8: #{_forward.1} parent=1 // pred_region
      %s30 = ssub.s32 256, 256
      %31 = vsyncadd [#allocation5], %s30
      %s32 = sshll.u32 [#allocation4], 4
      %s33 = int_to_ptr.vmem [resolvable:$true] %s32
      %38 = dma.hbm_to_vmem [thread:$0]  %s1, 256, %s33, [#allocation5], 128, 128, 8
    $region9: #{_forward.1} parent=1 // pred_fallthru
      _
    // Predicated region
    $region10: #{_forward.1} parent=1 // pred_check
      _
    $region11: #{_forward.1} parent=1 // pred_check_branch
      %40 = sbr.rel (0) target = $region13
    $region12: #{_forward.1} parent=1 // pred_region
      _
    $region13: #{_forward.1} parent=1 // pred_fallthru
      _
    // Predicated region
    $region14: #{_forward.1} parent=1 // pred_check
      _
    $region15: #{_forward.1} parent=1 // pred_check_branch
      %42 = sbr.rel (0) target = $region17
    $region16: #{_forward.1} parent=1 // pred_region
      %s44 = ssub.s32 2048, 2048
      %45 = vsyncadd [#allocation5], %s44
      %s46 = sshll.u32 [#allocation6], 4
      %s47 = int_to_ptr.vmem [resolvable:$true] %s46
      %52 = dma.hbm_to_vmem [thread:$0]  %s3, 2048, %s47, [#allocation5], 128, 128, 8
    $region17: #{_forward.1} parent=1 // pred_fallthru
      _
    // Predicated region
    $region18: #{_forward.1} parent=1 // pred_check
      _
    $region19: #{_forward.1} parent=1 // pred_check_branch
      %54 = sbr.rel (0) target = $region21
    $region20: #{_forward.1} parent=1 // pred_region
      %s56 = ssub.s32 16, 16
      %57 = vsyncadd [#allocation8], %s56
      %s59 = sshll.u32 [#allocation7], 4
      %s60 = int_to_ptr.vmem [resolvable:$true] %s59
      %62 = dma.hbm_to_vmem [thread:$0]  %s4, 16, %s60, [#allocation8]
    $region21: #{_forward.1} parent=1 // pred_fallthru
      _
    // Predicated region
    $region22: #{_forward.1} parent=1 // pred_check
      _
    $region23: #{_forward.1} parent=1 // pred_check_branch
      %64 = sbr.rel (0) target = $region25
    $region24: #{_forward.1} parent=1 // pred_region
      %s66 = ssub.s32 4096, 4096
      %67 = vsyncadd [#allocation8], %s66
      %s68 = sshll.u32 [#allocation9], 4
      %s69 = int_to_ptr.vmem [resolvable:$true] %s68
      %74 = dma.hbm_to_vmem [thread:$0]  %s5, 4096, %s69, [#allocation8], 256, 256, 16
    $region25: #{_forward.1} parent=1 // pred_fallthru
      _
    // Predicated region
    $region26: #{_forward.1} parent=1 // pred_check
      _
    $region27: #{_forward.1} parent=1 // pred_check_branch
      %76 = sbr.rel (0) target = $region29
    $region28: #{_forward.1} parent=1 // pred_region
      _
    $region29: #{_forward.1} parent=1 // pred_fallthru
      _
    // Predicated region
    $region30: #{_forward.1} parent=1 // pred_check
      _
    $region31: #{_forward.1} parent=1 // pred_check_branch
      %78 = sbr.rel (0) target = $region33
    $region32: #{_forward.1} parent=1 // pred_region
      %79 = dma.done [#allocation3], 128
    $region33: #{_forward.1} parent=1 // pred_fallthru
      _
    // Predicated region
    $region34: #{_forward.1} parent=1 // pred_check
      _
    $region35: #{_forward.1} parent=1 // pred_check_branch
      %81 = sbr.rel (0) target = $region37
    $region36: #{_forward.1} parent=1 // pred_region
      %82 = dma.done [#allocation5], 256
    $region37: #{_forward.1} parent=1 // pred_fallthru
      _
    // Predicated region
    $region38: #{_forward.1} parent=1 // pred_check
      _
    $region39: #{_forward.1} parent=1 // pred_check_branch
      %84 = sbr.rel (0) target = $region41
    $region40: #{_forward.1} parent=1 // pred_region
      %85 = dma.done [#allocation5], 2048
    $region41: #{_forward.1} parent=1 // pred_fallthru
      _
    // Predicated region
    $region42: #{_forward.1} parent=1 // pred_check
      _
    $region43: #{_forward.1} parent=1 // pred_check_branch
      %87 = sbr.rel (0) target = $region45
    $region44: #{_forward.1} parent=1 // pred_region
      %88 = dma.done [#allocation8], 16
    $region45: #{_forward.1} parent=1 // pred_fallthru
      _
    // Predicated region
    $region46: #{_forward.1} parent=1 // pred_check
      _
    $region47: #{_forward.1} parent=1 // pred_check_branch
      %90 = sbr.rel (0) target = $region49
    $region48: #{_forward.1} parent=1 // pred_region
      %91 = dma.done [#allocation8], 4096
    $region49: #{_forward.1} parent=1 // pred_fallthru
      _
    %v92 = vld [vmem:[#allocation2] sm:$0xff]
    %v93 = vld [vmem:[#allocation4] sm:$0xff]
    %v94 = vld [vmem:[#allocation4 + $0x8] sm:$0xff]
    %v95 = vld [vmem:[%s2] sm:$0x1]
    %v97 = vlaneseq
    %v98 = vshrl.u32 %v97, 7
    %v99 = vsub.s32 0, %v98
    %v100 = vrot.slane %v95, %v99
    %vm102 = vcmask 130048
    %v104 = vsel %vm102, %v92, 0
    %106 = vmatprep.subr.mxu0 0.0
    %107 = vmatpush1.msra.mxu0 0.0
    %108 = vmatprep.subr.mxu0 0.0
    %109 = vmatpush1.msra.mxu0 0.0
    %110 = vmatprep.subr.mxu0 0.0
    %111 = vmatpush1.msra.mxu0 0.0
    %112 = vmatprep.subr.mxu0 0.0
    %113 = vmatpush1.msra.mxu0 0.0
    %114 = vmatprep.subr.mxu0 0.0
    %115 = vmatpush1.msra.mxu0 0.0
    %116 = vmatprep.subr.mxu0 0.0
    %117 = vmatpush1.msra.mxu0 0.0
    %118 = vmatprep.subr.mxu0 0.0
    %119 = vmatpush1.msra.mxu0 0.0
    %120 = vmatprep.subr.mxu0 0.0
    %121 = vmatpush1.msra.mxu0 0.0
    %122 = vmatprep.subr.mxu0 0.0
    %123 = vmatpush1.msra.mxu0 0.0
    %124 = vmatprep.subr.mxu0 0.0
    %125 = vmatpush1.msra.mxu0 0.0
    %126 = vmatprep.subr.mxu0 0.0
    %127 = vmatpush1.msra.mxu0 0.0
    %128 = vmatprep.subr.mxu0 0.0
    %129 = vmatpush1.msra.mxu0 0.0
    %130 = vmatprep.subr.mxu0 0.0
    %131 = vmatpush1.msra.mxu0 0.0
    %132 = vmatprep.subr.mxu0 0.0
    %133 = vmatpush1.msra.mxu0 0.0
    %134 = vmatprep.subr.mxu0 0.0
    %135 = vmatpush1.msra.mxu0 %v94
    %136 = vmatprep.subr.mxu0 0.0
    %137 = vmatpush1.msra.mxu0 %v93
    %138 = vmatprep.subr.mxu0 0.0
    %139 = vmatpush2.msra.mxu0 0.0
    %140 = vmatprep.subr.mxu0 0.0
    %141 = vmatpush2.msra.mxu0 0.0
    %142 = vmatprep.subr.mxu0 0.0
    %143 = vmatpush2.msra.mxu0 0.0
    %144 = vmatprep.subr.mxu0 0.0
    %145 = vmatpush2.msra.mxu0 0.0
    %146 = vmatprep.subr.mxu0 0.0
    %147 = vmatpush2.msra.mxu0 0.0
    %148 = vmatprep.subr.mxu0 0.0
    %149 = vmatpush2.msra.mxu0 0.0
    %150 = vmatprep.subr.mxu0 0.0
    %151 = vmatpush2.msra.mxu0 0.0
    %152 = vmatprep.subr.mxu0 0.0
    %153 = vmatpush2.msra.mxu0 0.0
    %154 = vmatprep.subr.mxu0 0.0
    %155 = vmatpush2.msra.mxu0 0.0
    %156 = vmatprep.subr.mxu0 0.0
    %157 = vmatpush2.msra.mxu0 0.0
    %158 = vmatprep.subr.mxu0 0.0
    %159 = vmatpush2.msra.mxu0 0.0
    %160 = vmatprep.subr.mxu0 0.0
    %161 = vmatpush2.msra.mxu0 0.0
    %162 = vmatprep.subr.mxu0 0.0
    %163 = vmatpush2.msra.mxu0 0.0
    %164 = vmatprep.subr.mxu0 0.0
    %165 = vmatpush2.msra.mxu0 0.0
    %166 = vmatprep.subr.mxu0 0.0
    %167 = vmatpush2.msra.mxu0 0.0
    %168 = vmatprep.subr.mxu0 0.0
    %169 = vmatpush2.msra.mxu0 0.0
    %170 = vmatprep.mubr.f32.mxu0 0.0
    %171 = vmatmul.mubr.f32.gmra.mxu0 %v104
    %v172 = vpop.f32.mrf.mxu0
    %v173 = vadd.f32 %v100, %v172
    %v174 = vpop.f32.mrf.mxu0
    %175 = vdwg.mxu0
    %v176 = vmax.f32 %v173, 0.0
    %v177 = vld [vmem:[#allocation6] sm:$0xff]
    %v178 = vld [vmem:[#allocation6 + $0x8] sm:$0xff]
    %v179 = vld [vmem:[#allocation6 + $0x10] sm:$0xff]
    %v180 = vld [vmem:[#allocation6 + $0x18] sm:$0xff]
    %v181 = vld [vmem:[#allocation6 + $0x20] sm:$0xff]
    %v182 = vld [vmem:[#allocation6 + $0x28] sm:$0xff]
    %v183 = vld [vmem:[#allocation6 + $0x30] sm:$0xff]
    %v184 = vld [vmem:[#allocation6 + $0x38] sm:$0xff]
    %v185 = vld [vmem:[#allocation6 + $0x40] sm:$0xff]
    %v186 = vld [vmem:[#allocation6 + $0x48] sm:$0xff]
    %v187 = vld [vmem:[#allocation6 + $0x50] sm:$0xff]
    %v188 = vld [vmem:[#allocation6 + $0x58] sm:$0xff]
    %v189 = vld [vmem:[#allocation6 + $0x60] sm:$0xff]
    %v190 = vld [vmem:[#allocation6 + $0x68] sm:$0xff]
    %v191 = vld [vmem:[#allocation6 + $0x70] sm:$0xff]
    %v192 = vld [vmem:[#allocation6 + $0x78] sm:$0xff]
    %v193 = vld [vmem:[#allocation7] sm:$0x1]
    %v195 = vlaneseq
    %v196 = vshrl.u32 %v195, 7
    %v197 = vsub.s32 0, %v196
    %v198 = vrot.slane %v193, %v197
    %200 = vmatprep.subr.mxu0 0.0
    %201 = vmatpush1.msra.mxu0 %v192
    %202 = vmatprep.subr.mxu0 0.0
    %203 = vmatpush1.msra.mxu0 %v191
    %204 = vmatprep.subr.mxu0 0.0
    %205 = vmatpush1.msra.mxu0 %v190
    %206 = vmatprep.subr.mxu0 0.0
    %207 = vmatpush1.msra.mxu0 %v189
    %208 = vmatprep.subr.mxu0 0.0
    %209 = vmatpush1.msra.mxu0 %v188
    %210 = vmatprep.subr.mxu0 0.0
    %211 = vmatpush1.msra.mxu0 %v187
    %212 = vmatprep.subr.mxu0 0.0
    %213 = vmatpush1.msra.mxu0 %v186
    %214 = vmatprep.subr.mxu0 0.0
    %215 = vmatpush1.msra.mxu0 %v185
    %216 = vmatprep.subr.mxu0 0.0
    %217 = vmatpush1.msra.mxu0 %v184
    %218 = vmatprep.subr.mxu0 0.0
    %219 = vmatpush1.msra.mxu0 %v183
    %220 = vmatprep.subr.mxu0 0.0
    %221 = vmatpush1.msra.mxu0 %v182
    %222 = vmatprep.subr.mxu0 0.0
    %223 = vmatpush1.msra.mxu0 %v181
    %224 = vmatprep.subr.mxu0 0.0
    %225 = vmatpush1.msra.mxu0 %v180
    %226 = vmatprep.subr.mxu0 0.0
    %227 = vmatpush1.msra.mxu0 %v179
    %228 = vmatprep.subr.mxu0 0.0
    %229 = vmatpush1.msra.mxu0 %v178
    %230 = vmatprep.subr.mxu0 0.0
    %231 = vmatpush1.msra.mxu0 %v177
    %232 = vmatprep.subr.mxu0 0.0
    %233 = vmatpush2.msra.mxu0 0.0
    %234 = vmatprep.subr.mxu0 0.0
    %235 = vmatpush2.msra.mxu0 0.0
    %236 = vmatprep.subr.mxu0 0.0
    %237 = vmatpush2.msra.mxu0 0.0
    %238 = vmatprep.subr.mxu0 0.0
    %239 = vmatpush2.msra.mxu0 0.0
    %240 = vmatprep.subr.mxu0 0.0
    %241 = vmatpush2.msra.mxu0 0.0
    %242 = vmatprep.subr.mxu0 0.0
    %243 = vmatpush2.msra.mxu0 0.0
    %244 = vmatprep.subr.mxu0 0.0
    %245 = vmatpush2.msra.mxu0 0.0
    %246 = vmatprep.subr.mxu0 0.0
    %247 = vmatpush2.msra.mxu0 0.0
    %248 = vmatprep.subr.mxu0 0.0
    %249 = vmatpush2.msra.mxu0 0.0
    %250 = vmatprep.subr.mxu0 0.0
    %251 = vmatpush2.msra.mxu0 0.0
    %252 = vmatprep.subr.mxu0 0.0
    %253 = vmatpush2.msra.mxu0 0.0
    %254 = vmatprep.subr.mxu0 0.0
    %255 = vmatpush2.msra.mxu0 0.0
    %256 = vmatprep.subr.mxu0 0.0
    %257 = vmatpush2.msra.mxu0 0.0
    %258 = vmatprep.subr.mxu0 0.0
    %259 = vmatpush2.msra.mxu0 0.0
    %260 = vmatprep.subr.mxu0 0.0
    %261 = vmatpush2.msra.mxu0 0.0
    %262 = vmatprep.subr.mxu0 0.0
    %263 = vmatpush2.msra.mxu0 0.0
    %264 = vmatprep.mubr.f32.mxu0 0.0
    %265 = vmatmul.mubr.f32.gmra.mxu0 %v176
    %v266 = vpop.f32.mrf.mxu0
    %v267 = vadd.f32 %v198, %v266
    %v268 = vpop.f32.mrf.mxu0
    %269 = vdwg.mxu0
    %v270 = vmax.f32 %v267, 0.0
    %v271 = vld [vmem:[#allocation9] sm:$0xff]
    %v272 = vld [vmem:[#allocation9 + $0x8] sm:$0xff]
    %v273 = vld [vmem:[#allocation9 + $0x10] sm:$0xff]
    %v274 = vld [vmem:[#allocation9 + $0x18] sm:$0xff]
    %v275 = vld [vmem:[#allocation9 + $0x20] sm:$0xff]
    %v276 = vld [vmem:[#allocation9 + $0x28] sm:$0xff]
    %v277 = vld [vmem:[#allocation9 + $0x30] sm:$0xff]
    %v278 = vld [vmem:[#allocation9 + $0x38] sm:$0xff]
    %v279 = vld [vmem:[#allocation9 + $0x40] sm:$0xff]
    %v280 = vld [vmem:[#allocation9 + $0x48] sm:$0xff]
    %v281 = vld [vmem:[#allocation9 + $0x50] sm:$0xff]
    %v282 = vld [vmem:[#allocation9 + $0x58] sm:$0xff]
    %v283 = vld [vmem:[#allocation9 + $0x60] sm:$0xff]
    %v284 = vld [vmem:[#allocation9 + $0x68] sm:$0xff]
    %v285 = vld [vmem:[#allocation9 + $0x70] sm:$0xff]
    %v286 = vld [vmem:[#allocation9 + $0x78] sm:$0xff]
    %v287 = vld [vmem:[#allocation9 + $0x80] sm:$0xff]
    %v288 = vld [vmem:[#allocation9 + $0x88] sm:$0xff]
    %v289 = vld [vmem:[#allocation9 + $0x90] sm:$0xff]
    %v290 = vld [vmem:[#allocation9 + $0x98] sm:$0xff]
    %v291 = vld [vmem:[#allocation9 + $0xa0] sm:$0xff]
    %v292 = vld [vmem:[#allocation9 + $0xa8] sm:$0xff]
    %v293 = vld [vmem:[#allocation9 + $0xb0] sm:$0xff]
    %v294 = vld [vmem:[#allocation9 + $0xb8] sm:$0xff]
    %v295 = vld [vmem:[#allocation9 + $0xc0] sm:$0xff]
    %v296 = vld [vmem:[#allocation9 + $0xc8] sm:$0xff]
    %v297 = vld [vmem:[#allocation9 + $0xd0] sm:$0xff]
    %v298 = vld [vmem:[#allocation9 + $0xd8] sm:$0xff]
    %v299 = vld [vmem:[#allocation9 + $0xe0] sm:$0xff]
    %v300 = vld [vmem:[#allocation9 + $0xe8] sm:$0xff]
    %v301 = vld [vmem:[#allocation9 + $0xf0] sm:$0xff]
    %v302 = vld [vmem:[#allocation9 + $0xf8] sm:$0xff]
    %v303 = vld [vmem:[%s6] sm:$0x3]
    %v305 = vlaneseq
    %v306 = vshrl.u32 %v305, 7
    %v307 = vsub.s32 0, %v306
    %v308 = vrot.slane %v303, %v307
    %v309 = vlaneseq
    %v310 = vshrl.u32 %v309, 7
    %v311 = vsub.s32 1, %v310
    %v312 = vrot.slane %v303, %v311
    %315 = vmatprep.subr.mxu0 %v302
    %316 = vmatpush1.msra.mxu0 %v301
    %317 = vmatprep.subr.mxu0 %v300
    %318 = vmatpush1.msra.mxu0 %v299
    %319 = vmatprep.subr.mxu0 %v298
    %320 = vmatpush1.msra.mxu0 %v297
    %321 = vmatprep.subr.mxu0 %v296
    %322 = vmatpush1.msra.mxu0 %v295
    %323 = vmatprep.subr.mxu0 %v294
    %324 = vmatpush1.msra.mxu0 %v293
    %325 = vmatprep.subr.mxu0 %v292
    %326 = vmatpush1.msra.mxu0 %v291
    %327 = vmatprep.subr.mxu0 %v290
    %328 = vmatpush1.msra.mxu0 %v289
    %329 = vmatprep.subr.mxu0 %v288
    %330 = vmatpush1.msra.mxu0 %v287
    %331 = vmatprep.subr.mxu0 %v286
    %332 = vmatpush1.msra.mxu0 %v285
    %333 = vmatprep.subr.mxu0 %v284
    %334 = vmatpush1.msra.mxu0 %v283
    %335 = vmatprep.subr.mxu0 %v282
    %336 = vmatpush1.msra.mxu0 %v281
    %337 = vmatprep.subr.mxu0 %v280
    %338 = vmatpush1.msra.mxu0 %v279
    %339 = vmatprep.subr.mxu0 %v278
    %340 = vmatpush1.msra.mxu0 %v277
    %341 = vmatprep.subr.mxu0 %v276
    %342 = vmatpush1.msra.mxu0 %v275
    %343 = vmatprep.subr.mxu0 %v274
    %344 = vmatpush1.msra.mxu0 %v273
    %345 = vmatprep.subr.mxu0 %v272
    %346 = vmatpush1.msra.mxu0 %v271
    %347 = vmatprep.subr.mxu0 0.0
    %348 = vmatpush2.msra.mxu0 0.0
    %349 = vmatprep.subr.mxu0 0.0
    %350 = vmatpush2.msra.mxu0 0.0
    %351 = vmatprep.subr.mxu0 0.0
    %352 = vmatpush2.msra.mxu0 0.0
    %353 = vmatprep.subr.mxu0 0.0
    %354 = vmatpush2.msra.mxu0 0.0
    %355 = vmatprep.subr.mxu0 0.0
    %356 = vmatpush2.msra.mxu0 0.0
    %357 = vmatprep.subr.mxu0 0.0
    %358 = vmatpush2.msra.mxu0 0.0
    %359 = vmatprep.subr.mxu0 0.0
    %360 = vmatpush2.msra.mxu0 0.0
    %361 = vmatprep.subr.mxu0 0.0
    %362 = vmatpush2.msra.mxu0 0.0
    %363 = vmatprep.subr.mxu0 0.0
    %364 = vmatpush2.msra.mxu0 0.0
    %365 = vmatprep.subr.mxu0 0.0
    %366 = vmatpush2.msra.mxu0 0.0
    %367 = vmatprep.subr.mxu0 0.0
    %368 = vmatpush2.msra.mxu0 0.0
    %369 = vmatprep.subr.mxu0 0.0
    %370 = vmatpush2.msra.mxu0 0.0
    %371 = vmatprep.subr.mxu0 0.0
    %372 = vmatpush2.msra.mxu0 0.0
    %373 = vmatprep.subr.mxu0 0.0
    %374 = vmatpush2.msra.mxu0 0.0
    %375 = vmatprep.subr.mxu0 0.0
    %376 = vmatpush2.msra.mxu0 0.0
    %377 = vmatprep.subr.mxu0 0.0
    %378 = vmatpush2.msra.mxu0 0.0
    %379 = vmatprep.mubr.f32.mxu0 0.0
    %380 = vmatmul.mubr.f32.gmra.mxu0 %v270
    %v381 = vpop.f32.mrf.mxu0
    %v382 = vadd.f32 %v308, %v381
    %v383 = vpop.f32.mrf.mxu0
    %v384 = vadd.f32 %v312, %v383
    %385 = vdwg.mxu0
    %386 = vst [vmem:[%s7] sm:$0xff] %v382
    %387 = vst [vmem:[%s8] sm:$0xff] %v384
    // Predicated region
    $region50: #{_forward.1} parent=1 // pred_check
      _
    $region51: #{_forward.1} parent=1 // pred_check_branch
      %389 = sbr.rel (0) target = $region53
    $region52: #{_forward.1} parent=1 // pred_region
      _
    $region53: #{_forward.1} parent=1 // pred_fallthru
      _
    // Predicated region
    $region54: #{_forward.1} parent=1 // pred_check
      _
    $region55: #{_forward.1} parent=1 // pred_check_branch
      %391 = sbr.rel (0) target = $region57
    $region56: #{_forward.1} parent=1 // pred_region
      _
    $region57: #{_forward.1} parent=1 // pred_fallthru
      _
    // Predicated region
    $region58: #{_forward.1} parent=1 // pred_check
      _
    $region59: #{_forward.1} parent=1 // pred_check_branch
      %393 = sbr.rel (0) target = $region61
    $region60: #{_forward.1} parent=1 // pred_region
      _
    $region61: #{_forward.1} parent=1 // pred_fallthru
      _
    // Predicated region
    $region62: #{_forward.1} parent=1 // pred_check
      _
    $region63: #{_forward.1} parent=1 // pred_check_branch
      %395 = sbr.rel (0) target = $region65
    $region64: #{_forward.1} parent=1 // pred_region
      _
    $region65: #{_forward.1} parent=1 // pred_fallthru
      _
    %396 = vsyncpa [#allocation3], 1
    %397 = vsyncpa [#allocation5], 1
    %398 = vsyncpa [#allocation8], 1

</llo_original>
